<compile_context>
chip_gen: v7x
topology: tpu7x:2x2x1
jax: 0.10.0
libtpu: 0.0.40
codegen_flags: <defaults>
</compile_context>

<pallas_src>
import functools

import jax
import jax.numpy as jnp
from jax.experimental import pallas as pl
from jax.experimental.pallas import tpu as pltpu

KERNEL_SIZE = 5
SIGMA_BOUNDS = (0.2, 2.0)


def _gaussian_kernel1d(sigma, kernel_size=KERNEL_SIZE):
    # mirrors GaussianBlur._get_gaussian_kernel1d
    half = (kernel_size - 1) * 0.5
    x = jnp.linspace(-half, half, kernel_size, dtype=jnp.float32)
    pdf = jnp.exp(-0.5 * jnp.square(x / sigma))
    return pdf / jnp.sum(pdf)


def _blur_kernel(taps_ref, x_ref, o_ref, *, K, H, W, C):
    """Separable Gaussian blur of one image packed as an (H, C*W) slab.

    taps_ref : (B*2K,) f32 SMEM -- image b uses [b*2K : b*2K+K] = kx (W axis),
               [b*2K+K : (b+1)*2K] = ky (H axis).
    x_ref    : (1, H, C*W) VMEM -- channels packed along lanes.
    o_ref    : (1, H, C*W) VMEM.
    """
    b = pl.program_id(0)
    p = K // 2
    CW = C * W
    base = b * (2 * K)

    x = x_ref[0].astype(jnp.float32)                        # (H, CW)

    # Within-channel column index (0..W-1) and row index, for reflect masks.
    col = jax.lax.broadcasted_iota(jnp.int32, (H, CW), 1) % W
    row = jax.lax.broadcasted_iota(jnp.int32, (H, CW), 0)

    def pass_1d(v, axis, idx, n, tap0):
        """sum_{s=-p..p} tap(tap0+s+p) * reflect_shift(v, s) along `axis`.

        `idx` is the within-segment index along `axis`, `n` its extent.
        All shifts are pltpu.roll's (XLU); reflect boundaries (and the
        cross-channel leak of packed lane rolls) are patched with jnp.where
        on `idx` masks -- the patch values are themselves rolls of v, so
        everything stays in registers.
        """
        size = v.shape[axis]
        # r[d][i] == v[i + d] for every in-range (same-segment) i + d.
        r = {0: v}
        for d in range(1, p + 1):
            r[d] = pltpu.roll(v, (size - d) % size, axis)    # out[i] = v[i+d]
            r[-d] = pltpu.roll(v, d, axis)                   # out[i] = v[i-d]

        masks = {}

        def mask(i_b):
            if i_b not in masks:
                masks[i_b] = idx == i_b
            return masks[i_b]

        acc = None
        for t in range(K):                                   # static unroll
            s = t - p
            plane = r[s]
            if s > 0:
                # high edge: positions i = n-1-m need v[2(n-1) - i - s]
                for m in range(s):
                    plane = jnp.where(mask(n - 1 - m), r[2 * m - s], plane)
            elif s < 0:
                # low edge: positions i = m need v[-(i + s)]
                for m in range(-s):
                    plane = jnp.where(mask(m), r[-2 * m - s], plane)
            term = taps_ref[base + tap0 + t] * plane
            acc = term if acc is None else acc + term
        return acc

    # horizontal pass (kx along W / lanes), then vertical pass (ky along H).
    acc_h = pass_1d(x, 1, col, W, 0)
    out = pass_1d(acc_h, 0, row, H, K)

    o_ref[0] = out.astype(o_ref.dtype)


def gaussian_blur(imgs, xform_params, kernel_size=KERNEL_SIZE):
    """imgs: (B, C, H, W) f32; xform_params: (B, 2) f32 = (sigma_x, sigma_y)."""
    B, C, H, W = imgs.shape
    K = kernel_size
    p = K // 2
    assert H > p and W > p, "reflect padding requires H, W > kernel_size // 2"

    # Per-image separable 1D taps.  kx (sigma_x = params[:,0]) applies along W,
    # ky (sigma_y = params[:,1]) along H (matches torch.mm(ky[:,None], kx[None,:])).
    kx = jax.vmap(lambda s: _gaussian_kernel1d(s, K))(xform_params[:, 0])   # (B, K)
    ky = jax.vmap(lambda s: _gaussian_kernel1d(s, K))(xform_params[:, 1])   # (B, K)
    taps = jnp.concatenate([kx, ky], axis=1).astype(jnp.float32).reshape(-1)  # (B*2K,)

    # Lane-dense packing: (B, C, H, W) -> (B, H, C*W).  Wrapper-side layout
    # plumbing so the kernel's output last dim is as wide as possible.
    x_packed = jnp.transpose(imgs, (0, 2, 1, 3)).reshape(B, H, C * W)

    plane_bytes = C * H * W * 4
    vmem_limit = int(min(max(6 * plane_bytes + (1 << 20), 32 * 1024 * 1024),
                         128 * 1024 * 1024))

    out_packed = pl.pallas_call(
        functools.partial(_blur_kernel, K=K, H=H, W=W, C=C),
        out_shape=jax.ShapeDtypeStruct((B, H, C * W), imgs.dtype),
        grid_spec=pltpu.PrefetchScalarGridSpec(
            num_scalar_prefetch=0,
            grid=(B,),
            in_specs=[
                # flat tap table -> scalar memory (no 2-D SMEM padding waste)
                pl.BlockSpec(memory_space=pltpu.MemorySpace.SMEM),
                # one full packed image per grid step
                pl.BlockSpec((1, H, C * W), lambda b: (b, 0, 0)),
            ],
            out_specs=pl.BlockSpec((1, H, C * W), lambda b: (b, 0, 0)),
        ),
        compiler_params=pltpu.CompilerParams(
            dimension_semantics=("parallel",),
            vmem_limit_bytes=vmem_limit,
        ),
        cost_estimate=pl.CostEstimate(
            flops=22 * B * C * H * W,
            transcendentals=0,
            bytes_accessed=2 * B * C * H * W * 4,
        ),
    )(taps, x_packed)

    # unpack (B, H, C*W) -> (B, C, H, W)
    return out_packed.reshape(B, H, C, W).transpose(0, 2, 1, 3)


def gaussian_blur_reference(imgs, xform_params, kernel_size=KERNEL_SIZE):
    # Pure-JAX reference: direct 25-tap depthwise conv with reflect pad
    # (cross-correlation == convolution since the Gaussian kernel is symmetric).
    B, C, H, W = imgs.shape
    K = kernel_size
    p = K // 2
    kx = jax.vmap(lambda s: _gaussian_kernel1d(s, K))(xform_params[:, 0])
    ky = jax.vmap(lambda s: _gaussian_kernel1d(s, K))(xform_params[:, 1])
    k2 = ky[:, :, None] * kx[:, None, :]
    xp = jnp.pad(imgs, ((0, 0), (0, 0), (p, p), (p, p)), mode="reflect")
    out = jnp.zeros_like(imgs)
    for ki in range(K):
        for kj in range(K):
            out = out + k2[:, ki, kj][:, None, None, None] * xp[:, :, ki:ki + H, kj:kj + W]
    return out


if __name__ == "__main__":
    B, C, H, W = 2, 4, 16, 16

    key = jax.random.PRNGKey(0)
    k_img, k_sig = jax.random.split(key)
    imgs = jax.random.normal(k_img, (B, C, H, W), dtype=jnp.float32)

    # (B, 2) sigma parameters, random_init=True style bounded-uniform draw.
    xform_params = jax.random.uniform(
        k_sig, (B, 2), dtype=jnp.float32,
        minval=SIGMA_BOUNDS[0], maxval=SIGMA_BOUNDS[1])

    out = jax.block_until_ready(gaussian_blur(imgs, xform_params))

    ref = gaussian_blur_reference(imgs, xform_params)
    assert out.shape == (B, C, H, W)
    assert jnp.allclose(out, ref, atol=1e-5, rtol=1e-5), \
        float(jnp.max(jnp.abs(out - ref)))

    print("KERNEL_OK")
</pallas_src>

<mosaic_0001>
module attributes {stable_mosaic.version = 11 : i64} {
  func.func @_blur_kernel(%arg0: i32, %arg1: memref<20xf32, #tpu.memory_space<smem>>, %arg2: memref<1x16x64xf32, #tpu.memory_space<vmem>>, %arg3: memref<1x16x64xf32, #tpu.memory_space<vmem>>) attributes {dimension_semantics = [#tpu.dimension_semantics<parallel>], iteration_bounds = array<i64: 2>, scalar_prefetch = 0 : i64, scratch_operands = 0 : i64, tpu.core_type = #tpu.core_type<tc>, window_params = [{transform_indices = @transform_0, window_bounds = array<i64: 20>}, {transform_indices = @transform_1, window_bounds = array<i64: 1, 16, 64>}, {transform_indices = @transform_2, window_bounds = array<i64: 1, 16, 64>}]} {
    %c10_i32 = arith.constant 10 : i32
    %0 = arith.muli %arg0, %c10_i32 : i32
    %c0 = arith.constant 0 : index
    %c0_0 = arith.constant 0 : index
    %c0_1 = arith.constant 0 : index
    %1 = vector.load %arg2[%c0, %c0_0, %c0_1] : memref<1x16x64xf32, #tpu.memory_space<vmem>>, vector<1x16x64xf32>
    %2 = vector.shape_cast %1 : vector<1x16x64xf32> to vector<16x64xf32>
    %3 = tpu.iota {dimensions = array<i32: 1>} : vector<16x64xi32>
    %c16_i32 = arith.constant 16 : i32
    %c0_i32 = arith.constant 0 : i32
    %4 = arith.cmpi eq, %c16_i32, %c0_i32 : i32
    %c1_i32 = arith.constant 1 : i32
    %5 = arith.select %4, %c1_i32, %c16_i32 : i32
    %6 = vector.broadcast %5 : i32 to vector<16x64xi32>
    %7 = arith.remsi %3, %6 : vector<16x64xi32>
    %c0_i32_2 = arith.constant 0 : i32
    %8 = vector.broadcast %c0_i32_2 : i32 to vector<16x64xi32>
    %9 = arith.cmpi ne, %7, %8 : vector<16x64xi32>
    %c0_i32_3 = arith.constant 0 : i32
    %10 = vector.broadcast %c0_i32_3 : i32 to vector<16x64xi32>
    %11 = arith.cmpi slt, %7, %10 : vector<16x64xi32>
    %c0_i32_4 = arith.constant 0 : i32
    %12 = arith.cmpi slt, %5, %c0_i32_4 : i32
    %13 = vector.broadcast %12 : i1 to vector<16x64xi1>
    %14 = vector.broadcast %13 : vector<16x64xi1> to vector<16x64xi1>
    %15 = arith.xori %11, %14 : vector<16x64xi1>
    %16 = arith.andi %15, %9 : vector<16x64xi1>
    %17 = vector.broadcast %5 : i32 to vector<16x64xi32>
    %18 = arith.addi %7, %17 : vector<16x64xi32>
    %19 = arith.select %16, %18, %7 : vector<16x64xi1>, vector<16x64xi32>
    %20 = tpu.iota {dimensions = array<i32: 0>} : vector<16x64xi32>
    %c63_i32 = arith.constant 63 : i32
    %21 = tpu.dynamic_rotate %2 by %c63_i32 dim 1 : vector<16x64xf32>, i32 -> vector<16x64xf32>
    %c1_i32_5 = arith.constant 1 : i32
    %22 = tpu.dynamic_rotate %2 by %c1_i32_5 dim 1 : vector<16x64xf32>, i32 -> vector<16x64xf32>
    %c62_i32 = arith.constant 62 : i32
    %23 = tpu.dynamic_rotate %2 by %c62_i32 dim 1 : vector<16x64xf32>, i32 -> vector<16x64xf32>
    %c2_i32 = arith.constant 2 : i32
    %24 = tpu.dynamic_rotate %2 by %c2_i32 dim 1 : vector<16x64xf32>, i32 -> vector<16x64xf32>
    %c0_i32_6 = arith.constant 0 : i32
    %25 = vector.broadcast %c0_i32_6 : i32 to vector<16x64xi32>
    %26 = arith.cmpi eq, %19, %25 : vector<16x64xi32>
    %27 = arith.select %26, %23, %24 : vector<16x64xi1>, vector<16x64xf32>
    %c1_i32_7 = arith.constant 1 : i32
    %28 = vector.broadcast %c1_i32_7 : i32 to vector<16x64xi32>
    %29 = arith.cmpi eq, %19, %28 : vector<16x64xi32>
    %30 = arith.select %29, %2, %27 : vector<16x64xi1>, vector<16x64xf32>
    %c0_i32_8 = arith.constant 0 : i32
    %31 = arith.addi %0, %c0_i32_8 : i32
    %c0_i32_9 = arith.constant 0 : i32
    %32 = arith.addi %31, %c0_i32_9 : i32
    %33 = arith.index_cast %32 : i32 to index
    %34 = memref.load %arg1[%33] : memref<20xf32, #tpu.memory_space<smem>>
    %35 = vector.broadcast %34 : f32 to vector<16x64xf32>
    %36 = arith.mulf %35, %30 : vector<16x64xf32>
    %37 = arith.select %26, %21, %22 : vector<16x64xi1>, vector<16x64xf32>
    %c0_i32_10 = arith.constant 0 : i32
    %38 = arith.addi %0, %c0_i32_10 : i32
    %c1_i32_11 = arith.constant 1 : i32
    %39 = arith.addi %38, %c1_i32_11 : i32
    %40 = arith.index_cast %39 : i32 to index
    %41 = memref.load %arg1[%40] : memref<20xf32, #tpu.memory_space<smem>>
    %42 = vector.broadcast %41 : f32 to vector<16x64xf32>
    %43 = arith.mulf %42, %37 : vector<16x64xf32>
    %44 = arith.addf %36, %43 : vector<16x64xf32>
    %c0_i32_12 = arith.constant 0 : i32
    %45 = arith.addi %0, %c0_i32_12 : i32
    %c2_i32_13 = arith.constant 2 : i32
    %46 = arith.addi %45, %c2_i32_13 : i32
    %47 = arith.index_cast %46 : i32 to index
    %48 = memref.load %arg1[%47] : memref<20xf32, #tpu.memory_space<smem>>
    %49 = vector.broadcast %48 : f32 to vector<16x64xf32>
    %50 = arith.mulf %49, %2 : vector<16x64xf32>
    %51 = arith.addf %44, %50 : vector<16x64xf32>
    %c15_i32 = arith.constant 15 : i32
    %52 = vector.broadcast %c15_i32 : i32 to vector<16x64xi32>
    %53 = arith.cmpi eq, %19, %52 : vector<16x64xi32>
    %54 = arith.select %53, %22, %21 : vector<16x64xi1>, vector<16x64xf32>
    %c0_i32_14 = arith.constant 0 : i32
    %55 = arith.addi %0, %c0_i32_14 : i32
    %c3_i32 = arith.constant 3 : i32
    %56 = arith.addi %55, %c3_i32 : i32
    %57 = arith.index_cast %56 : i32 to index
    %58 = memref.load %arg1[%57] : memref<20xf32, #tpu.memory_space<smem>>
    %59 = vector.broadcast %58 : f32 to vector<16x64xf32>
    %60 = arith.mulf %59, %54 : vector<16x64xf32>
    %61 = arith.addf %51, %60 : vector<16x64xf32>
    %62 = arith.select %53, %24, %23 : vector<16x64xi1>, vector<16x64xf32>
    %c14_i32 = arith.constant 14 : i32
    %63 = vector.broadcast %c14_i32 : i32 to vector<16x64xi32>
    %64 = arith.cmpi eq, %19, %63 : vector<16x64xi32>
    %65 = arith.select %64, %2, %62 : vector<16x64xi1>, vector<16x64xf32>
    %c0_i32_15 = arith.constant 0 : i32
    %66 = arith.addi %0, %c0_i32_15 : i32
    %c4_i32 = arith.constant 4 : i32
    %67 = arith.addi %66, %c4_i32 : i32
    %68 = arith.index_cast %67 : i32 to index
    %69 = memref.load %arg1[%68] : memref<20xf32, #tpu.memory_space<smem>>
    %70 = vector.broadcast %69 : f32 to vector<16x64xf32>
    %71 = arith.mulf %70, %65 : vector<16x64xf32>
    %72 = arith.addf %61, %71 : vector<16x64xf32>
    %c15_i32_16 = arith.constant 15 : i32
    %73 = tpu.dynamic_rotate %72 by %c15_i32_16 dim 0 : vector<16x64xf32>, i32 -> vector<16x64xf32>
    %c1_i32_17 = arith.constant 1 : i32
    %74 = tpu.dynamic_rotate %72 by %c1_i32_17 dim 0 : vector<16x64xf32>, i32 -> vector<16x64xf32>
    %c14_i32_18 = arith.constant 14 : i32
    %75 = tpu.dynamic_rotate %72 by %c14_i32_18 dim 0 : vector<16x64xf32>, i32 -> vector<16x64xf32>
    %c2_i32_19 = arith.constant 2 : i32
    %76 = tpu.dynamic_rotate %72 by %c2_i32_19 dim 0 : vector<16x64xf32>, i32 -> vector<16x64xf32>
    %c0_i32_20 = arith.constant 0 : i32
    %77 = vector.broadcast %c0_i32_20 : i32 to vector<16x64xi32>
    %78 = arith.cmpi eq, %20, %77 : vector<16x64xi32>
    %79 = arith.select %78, %75, %76 : vector<16x64xi1>, vector<16x64xf32>
    %c1_i32_21 = arith.constant 1 : i32
    %80 = vector.broadcast %c1_i32_21 : i32 to vector<16x64xi32>
    %81 = arith.cmpi eq, %20, %80 : vector<16x64xi32>
    %82 = arith.select %81, %72, %79 : vector<16x64xi1>, vector<16x64xf32>
    %c5_i32 = arith.constant 5 : i32
    %83 = arith.addi %0, %c5_i32 : i32
    %c0_i32_22 = arith.constant 0 : i32
    %84 = arith.addi %83, %c0_i32_22 : i32
    %85 = arith.index_cast %84 : i32 to index
    %86 = memref.load %arg1[%85] : memref<20xf32, #tpu.memory_space<smem>>
    %87 = vector.broadcast %86 : f32 to vector<16x64xf32>
    %88 = arith.mulf %87, %82 : vector<16x64xf32>
    %89 = arith.select %78, %73, %74 : vector<16x64xi1>, vector<16x64xf32>
    %c5_i32_23 = arith.constant 5 : i32
    %90 = arith.addi %0, %c5_i32_23 : i32
    %c1_i32_24 = arith.constant 1 : i32
    %91 = arith.addi %90, %c1_i32_24 : i32
    %92 = arith.index_cast %91 : i32 to index
    %93 = memref.load %arg1[%92] : memref<20xf32, #tpu.memory_space<smem>>
    %94 = vector.broadcast %93 : f32 to vector<16x64xf32>
    %95 = arith.mulf %94, %89 : vector<16x64xf32>
    %96 = arith.addf %88, %95 : vector<16x64xf32>
    %c5_i32_25 = arith.constant 5 : i32
    %97 = arith.addi %0, %c5_i32_25 : i32
    %c2_i32_26 = arith.constant 2 : i32
    %98 = arith.addi %97, %c2_i32_26 : i32
    %99 = arith.index_cast %98 : i32 to index
    %100 = memref.load %arg1[%99] : memref<20xf32, #tpu.memory_space<smem>>
    %101 = vector.broadcast %100 : f32 to vector<16x64xf32>
    %102 = arith.mulf %101, %72 : vector<16x64xf32>
    %103 = arith.addf %96, %102 : vector<16x64xf32>
    %c15_i32_27 = arith.constant 15 : i32
    %104 = vector.broadcast %c15_i32_27 : i32 to vector<16x64xi32>
    %105 = arith.cmpi eq, %20, %104 : vector<16x64xi32>
    %106 = arith.select %105, %74, %73 : vector<16x64xi1>, vector<16x64xf32>
    %c5_i32_28 = arith.constant 5 : i32
    %107 = arith.addi %0, %c5_i32_28 : i32
    %c3_i32_29 = arith.constant 3 : i32
    %108 = arith.addi %107, %c3_i32_29 : i32
    %109 = arith.index_cast %108 : i32 to index
    %110 = memref.load %arg1[%109] : memref<20xf32, #tpu.memory_space<smem>>
    %111 = vector.broadcast %110 : f32 to vector<16x64xf32>
    %112 = arith.mulf %111, %106 : vector<16x64xf32>
    %113 = arith.addf %103, %112 : vector<16x64xf32>
    %114 = arith.select %105, %76, %75 : vector<16x64xi1>, vector<16x64xf32>
    %c14_i32_30 = arith.constant 14 : i32
    %115 = vector.broadcast %c14_i32_30 : i32 to vector<16x64xi32>
    %116 = arith.cmpi eq, %20, %115 : vector<16x64xi32>
    %117 = arith.select %116, %72, %114 : vector<16x64xi1>, vector<16x64xf32>
    %c5_i32_31 = arith.constant 5 : i32
    %118 = arith.addi %0, %c5_i32_31 : i32
    %c4_i32_32 = arith.constant 4 : i32
    %119 = arith.addi %118, %c4_i32_32 : i32
    %120 = arith.index_cast %119 : i32 to index
    %121 = memref.load %arg1[%120] : memref<20xf32, #tpu.memory_space<smem>>
    %122 = vector.broadcast %121 : f32 to vector<16x64xf32>
    %123 = arith.mulf %122, %117 : vector<16x64xf32>
    %124 = arith.addf %113, %123 : vector<16x64xf32>
    %c0_33 = arith.constant 0 : index
    %c0_34 = arith.constant 0 : index
    %c0_35 = arith.constant 0 : index
    %125 = vector.load %arg3[%c0_33, %c0_34, %c0_35] : memref<1x16x64xf32, #tpu.memory_space<vmem>>, vector<1x16x64xf32>
    %126 = vector.shape_cast %125 : vector<1x16x64xf32> to vector<16x64xf32>
    %127 = vector.shape_cast %124 : vector<16x64xf32> to vector<1x16x64xf32>
    tpu.vector_store %arg3[%c0_33, %c0_34, %c0_35], %127 {strides = array<i32>} : memref<1x16x64xf32, #tpu.memory_space<vmem>>, vector<1x16x64xf32>,
    return
  }
  func.func @transform_0(%arg0: i32) -> i32 {
    %c0_i32 = arith.constant 0 : i32
    %c0_i32_0 = arith.constant 0 : i32
    return %c0_i32 : i32
  }
  func.func @transform_1(%arg0: i32) -> (i32, i32, i32) {
    %c0_i32 = arith.constant 0 : i32
    %c0_i32_0 = arith.constant 0 : i32
    %c0_i32_1 = arith.constant 0 : i32
    return %arg0, %c0_i32, %c0_i32_0 : i32, i32, i32
  }
  func.func @transform_2(%arg0: i32) -> (i32, i32, i32) {
    %c0_i32 = arith.constant 0 : i32
    %c0_i32_0 = arith.constant 0 : i32
    %c0_i32_1 = arith.constant 0 : i32
    return %arg0, %c0_i32, %c0_i32_0 : i32, i32, i32
  }
}

</mosaic_0001>

<llo_original>
// kernel: tpu_custom_call.1
$region0: #{tpu_custom_call.1}
  #allocation0 [shape = 'u32[]', space=smem, size = 0x4, offset = 0x4, fixed_abs, tag = 'smem constant byte address 0x4 - core index']
  #allocation1 [shape = 'u32[144,128]{1,0:T(1,128)}', space=vmem, size = 0x12000, scoped, tag = 'internal scratch']
  %s0 = inlined_call_operand.hbm [shape: f32[20], index: 0, kind: input, shape index: {}]
  %s1 = inlined_call_operand.hbm [shape: f32[2,16,64], index: 1, kind: input, shape index: {}]
  %s2 = inlined_call_operand.hbm [shape: f32[2,16,64], index: 2, kind: output, shape index: {}]
  %s3 = sld [smem:[#allocation0]]
  $region49: #{tpu_custom_call.1} parent=0
    _
  %s5 = ssub.s32 1, %s3
  %s6 = scalar_select 0, %s5, %s3
  $region1: #{tpu_custom_call.1} parent=0
    #allocation2 [shape = 'u8[512]{0}', space=smem, size = 0x200, scoped, tag = 'input window, operand 0, single buffered']
    #allocation3 [shape = 's32[2]{0}', space=sflag, size = 0x8, scoped, tag = 'scoped memory for tpu_custom_call.1']
    #allocation4 [shape = 's32[2]{0}', space=sflag, size = 0x8, scoped, tag = 'scoped memory for tpu_custom_call.1']
    #allocation5 [shape = 's32[2]{0}', space=sflag, size = 0x8, scoped, tag = 'scoped memory for tpu_custom_call.1']
    #allocation6 [shape = 'u8[16384]{0}', space=vmem, size = 0x4000, scoped, tag = 'input window, operand 1']
    #allocation7 [shape = 'u8[16384]{0}', space=vmem, size = 0x4000, scoped, tag = 'output window, operand 0']
    %7 = vsyncpa [#allocation5], 0
    %8 = vsyncpa [#allocation3], 0
    %s9 = scalar_lea.sflag [#allocation3], 1
    %10 = vsyncpa %s9, 0
    %11 = vsyncpa [#allocation4], 0
    %s12 = scalar_lea.sflag [#allocation4], 1
    %13 = vsyncpa %s12, 0
    loop: start=0, step=1, limit=4
    $region2: #{tpu_custom_call.1} parent=1 // loop_pre_header
      _
    $region3: #{tpu_custom_call.1} parent=1 // loop_header
      %s15 = sphi 0, %s19
      %p16 = scmp.ge.s32.totalorder %s15, 4
      %s23 = sphi 0, %s23
      %s25 = sphi 0, %s23
      %s26 = sphi 0, %s25
      %s40 = sphi 0, %s26
      %s46 = sphi 0, %s48
      %s49 = sphi 0, %s46
      %s50 = sphi 0, %s49
      %s66 = sphi 0, %s50
      %s72 = sphi 0, %s74
      %s75 = sphi 0, %s72
      %s76 = sphi 0, %s75
      %s92 = sphi 0, %s76
    $region4: #{tpu_custom_call.1} parent=1 // loop_header_branch
      %18 = sbr.rel (%p16) target = $region8
    $region5: #{tpu_custom_call.1} parent=1 // loop_body
      %s20 = ssub.s32 %s15, 1
      %s21 = ssub.s32 %s15, 2
      %s22 = sadd.s32 %s15, 1
      %s24 = sadd.s32 %s23, 1
      %p27 = scmp.eq.s32.totalorder %s15, 1
      %p28 = scmp.ne.s32.totalorder %s23, %s25
      %p29 = scmp.eq.s32.totalorder %s15, 0
      %p30 = por %p28, %p29
      %p31 = scmp.ne.s32.totalorder %s23, %s25
      %p32 = scmp.eq.s32.totalorder %s20, 1
      %p33 = por %p31, %p32
      %p34 = scmp.ne.s32.totalorder %s25, %s26
      %p35 = scmp.eq.s32.totalorder %s20, 0
      %p36 = por %p34, %p35
      %p37 = scmp.ne.s32.totalorder %s25, %s26
      %p38 = scmp.eq.s32.totalorder %s21, 1
      %p39 = por %p37, %p38
      %p41 = scmp.ne.s32.totalorder %s26, %s40
      %p42 = scmp.eq.s32.totalorder %s21, 0
      %p43 = por %p41, %p42
      %s44 = ssub.s32 %s15, %s22
      %p45 = scmp.eq.s32.totalorder %s44, 0
      %s47 = sadd.s32 %s46, 1
      %s48 = scalar_select %p45, %s46, %s47
      %p51 = pneg %p45
      %p52 = scmp.eq.s32.totalorder %s15, 1
      %p53 = por %p51, %p52
      %p54 = scmp.ne.s32.totalorder %s46, %s49
      %p55 = scmp.eq.s32.totalorder %s15, 0
      %p56 = por %p54, %p55
      %p57 = scmp.ne.s32.totalorder %s46, %s49
      %p58 = scmp.eq.s32.totalorder %s20, 1
      %p59 = por %p57, %p58
      %p60 = scmp.ne.s32.totalorder %s49, %s50
      %p61 = scmp.eq.s32.totalorder %s20, 0
      %p62 = por %p60, %p61
      %p63 = scmp.ne.s32.totalorder %s49, %s50
      %p64 = scmp.eq.s32.totalorder %s21, 1
      %p65 = por %p63, %p64
      %p67 = scmp.ne.s32.totalorder %s50, %s66
      %p68 = scmp.eq.s32.totalorder %s21, 0
      %p69 = por %p67, %p68
      %s70 = ssub.s32 %s15, %s22
      %p71 = scmp.eq.s32.totalorder %s70, 0
      %s73 = sadd.s32 %s72, 1
      %s74 = scalar_select %p71, %s72, %s73
      %p77 = pneg %p71
      %p78 = scmp.eq.s32.totalorder %s15, 1
      %p79 = por %p77, %p78
      %p80 = scmp.ne.s32.totalorder %s72, %s75
      %p81 = scmp.eq.s32.totalorder %s15, 0
      %p82 = por %p80, %p81
      %p83 = scmp.ne.s32.totalorder %s72, %s75
      %p84 = scmp.eq.s32.totalorder %s20, 1
      %p85 = por %p83, %p84
      %p86 = scmp.ne.s32.totalorder %s75, %s76
      %p87 = scmp.eq.s32.totalorder %s20, 0
      %p88 = por %p86, %p87
      %p89 = scmp.ne.s32.totalorder %s75, %s76
      %p90 = scmp.eq.s32.totalorder %s21, 1
      %p91 = por %p89, %p90
      %p93 = scmp.ne.s32.totalorder %s76, %s92
      %p94 = scmp.eq.s32.totalorder %s21, 0
      %p95 = por %p93, %p94
      %p96 = scmp.le.s32.totalorder 1, %s15
      %p97 = scmp.lt.s32.totalorder %s15, 3
      %p98 = pnand %p96, %p97
      %p99 = pneg %p98
      // Predicated region
      $region9: #{tpu_custom_call.1} parent=5 // pred_check
        _
      $region10: #{tpu_custom_call.1} parent=5 // pred_check_branch
        %101 = sbr.rel (%p98) target = $region12
      $region11: #{tpu_custom_call.1} parent=5 // pred_region
        %s102 = ssub.s32 %s15, 1
        // Predicated region
        $region13: #{tpu_custom_call.1} parent=11 // pred_check
          %p103 = pneg %p36
        $region14: #{tpu_custom_call.1} parent=11 // pred_check_branch
          %105 = sbr.rel (%p103) target = $region16
        $region15: #{tpu_custom_call.1} parent=11 // pred_region
          %s107 = ssub.s32 16, 16
          %108 = vsyncadd [#allocation5], %s107
          %111 = dma.hbm_to_smem %s0, 16, [#allocation2], [#allocation5]
        $region16: #{tpu_custom_call.1} parent=11 // pred_fallthru
          _
      $region12: #{tpu_custom_call.1} parent=5 // pred_fallthru
        _
      %p112 = scmp.lt.s32.totalorder %s15, 2
      // Predicated region
      $region17: #{tpu_custom_call.1} parent=5 // pred_check
        %p113 = pneg %p112
      $region18: #{tpu_custom_call.1} parent=5 // pred_check_branch
        %115 = sbr.rel (%p113) target = $region20
      $region19: #{tpu_custom_call.1} parent=5 // pred_region
        // Predicated region
        $region21: #{tpu_custom_call.1} parent=19 // pred_check
          %p116 = pneg %p56
        $region22: #{tpu_custom_call.1} parent=19 // pred_check_branch
          %118 = sbr.rel (%p116) target = $region24
        $region23: #{tpu_custom_call.1} parent=19 // pred_region
          %s119 = sand.u32 %s46, 1
          %s120 = scalar_lea.sflag [#allocation3], %s119
          %s121 = sand.u32 %s46, 1
          %s122 = smul.addr %s121, 16
          %s123 = scalar_lea.vmem [#allocation6], %s122
          %s125 = ssub.s32 256, 256
          %126 = vsyncadd %s120, %s125
          %s127 = smul.addr %s15, 2
          %s128 = smul.addr %s127, 128
          %s129 = scalar_lea.hbm %s1, %s128
          %s130 = sshll.u32 %s123, 4
          %s131 = int_to_ptr.vmem [resolvable:$true] %s130
          %136 = dma.hbm_to_vmem [thread:$0]  %s129, 256, %s131, %s120, 128, 128, 8
        $region24: #{tpu_custom_call.1} parent=19 // pred_fallthru
          _
      $region20: #{tpu_custom_call.1} parent=5 // pred_fallthru
        _
      %p137 = scmp.le.s32.totalorder 1, %s15
      %p138 = scmp.lt.s32.totalorder %s15, 3
      %p139 = pnand %p137, %p138
      %p140 = pneg %p139
      // Predicated region
      $region25: #{tpu_custom_call.1} parent=5 // pred_check
        _
      $region26: #{tpu_custom_call.1} parent=5 // pred_check_branch
        %142 = sbr.rel (%p139) target = $region28
      $region27: #{tpu_custom_call.1} parent=5 // pred_region
        %s143 = ssub.s32 %s15, 1
        // Predicated region
        $region29: #{tpu_custom_call.1} parent=27 // pred_check
          %p144 = pneg %p36
        $region30: #{tpu_custom_call.1} parent=27 // pred_check_branch
          %146 = sbr.rel (%p144) target = $region32
        $region31: #{tpu_custom_call.1} parent=27 // pred_region
          %147 = dma.done [#allocation5], 16
        $region32: #{tpu_custom_call.1} parent=27 // pred_fallthru
          _
        %s148 = sand.u32 %s49, 1
        %s149 = scalar_lea.sflag [#allocation3], %s148
        %s150 = sand.u32 %s49, 1
        %s151 = smul.addr %s150, 16
        %s152 = scalar_lea.vmem [#allocation6], %s151
        // Predicated region
        $region33: #{tpu_custom_call.1} parent=27 // pred_check
          %p153 = pneg %p62
        $region34: #{tpu_custom_call.1} parent=27 // pred_check_branch
          %155 = sbr.rel (%p153) target = $region36
        $region35: #{tpu_custom_call.1} parent=27 // pred_region
          %156 = dma.done %s149, 256
        $region36: #{tpu_custom_call.1} parent=27 // pred_fallthru
          _
        %157 = sfence
        %p158 = pneg %p36
        %p159 = pneg %p33
        %s160 = sand.u32 %s49, 1
        %s161 = scalar_lea.sflag [#allocation3], %s160
        %s162 = sand.u32 %s49, 1
        %s163 = smul.addr %s162, 16
        %s164 = scalar_lea.vmem [#allocation6], %s163
        %p165 = pneg %p62
        %p166 = pneg %p59
        %p167 = pneg %p88
        %p168 = pneg %p85
        %s169 = sand.u32 %s75, 1
        %s170 = scalar_lea.sflag [#allocation4], %s169
        %s171 = sand.u32 %s75, 1
        %s172 = smul.addr %s171, 16
        %s173 = scalar_lea.vmem [#allocation7], %s172
        %s174 = smul.u32 %s20, 10
        %v175 = vld [vmem:[%s152] sm:$0xff]
        %v176 = vld [vmem:[%s152 + $0x8] sm:$0xff]
        %v177 = vlaneseq
        %v178 = vand.u32 %v177, 127
        %vm179 = vcmp.lt.s32.totalorder %v178, 0
        %v180 = vsub.s32 0, %v178
        %v181 = vsel %vm179, %v180, %v178
        %v182 = vshrl.u32 %v181, 4
        %v183 = vand.u32 %v181, 15
        %v184 = vsub.s32 0, %v183
        %v185 = vsel %vm179, %v184, %v183
        %vm186 = vcmp.ne.s32.totalorder %v185, 0
        %vm187 = vcmp.lt.s32.totalorder %v185, 0
        %vm188 = vmand %vm187, %vm186
        %v189 = vadd.s32 %v185, 16
        %v190 = vsel %vm188, %v189, %v185
        %v191 = vlaneseq
        %v192 = vshrl.u32 %v191, 7
        %v193 = vadd.s32 %v192, 8
        %vm194 = vcmask 1048064
        %195 = vrot.lane.b32.xlu0 %v175, 64
        %v196 = vpop.permute.xlu0 %195
        %v197 = vsel %vm194, %v196, %v175
        %198 = vrot.lane.b32.xlu0 %v176, 64
        %v199 = vpop.permute.xlu0 %198
        %v200 = vsel %vm194, %v199, %v176
        %201 = vrot.lane.b32.xlu0 %v197, 64
        %v202 = vpop.permute.xlu0 %201
        %203 = vrot.lane.b32.xlu0 %v200, 64
        %v204 = vpop.permute.xlu0 %203
        %v205 = vsel %vm194, %v202, %v175
        %v206 = vsel %vm194, %v204, %v176
        %vm207 = vcmp.eq.s32.totalorder %v190, 0
        %210 = vrot.lane.b32.xlu0 %v205, 126
        %v211 = vpop.permute.xlu0 %210
        %212 = vrot.lane.b32.xlu0 %v206, 126
        %v213 = vpop.permute.xlu0 %212
        %216 = vrot.lane.b32.xlu0 %v205, 66
        %v217 = vpop.permute.xlu0 %216
        %218 = vrot.lane.b32.xlu0 %v206, 66
        %v219 = vpop.permute.xlu0 %218
        %v222 = vsel %vm207, %v211, %v217
        %v223 = vsel %vm207, %v213, %v219
        %vm224 = vcmp.eq.s32.totalorder %v190, 1
        %v225 = vsel %vm224, %v175, %v222
        %v226 = vsel %vm224, %v176, %v223
        %s227 = sld [smem:[#allocation2 + %s174]]
        %v228 = vstv %s227
        %v229 = vmul.f32 %v228, %v225
        %v230 = vmul.f32 %v228, %v226
        %231 = vrot.lane.b32.xlu0 %v205, 127
        %v232 = vpop.permute.xlu0 %231
        %233 = vrot.lane.b32.xlu0 %v206, 127
        %v234 = vpop.permute.xlu0 %233
        %237 = vrot.lane.b32.xlu0 %v205, 65
        %v238 = vpop.permute.xlu0 %237
        %239 = vrot.lane.b32.xlu0 %v206, 65
        %v240 = vpop.permute.xlu0 %239
        %v243 = vsel %vm207, %v232, %v238
        %v244 = vsel %vm207, %v234, %v240
        %s245 = sadd.s32 %s174, 1
        %s246 = sld [smem:[#allocation2 + %s245]]
        %v247 = vstv %s246
        %v248 = vmul.f32 %v247, %v243
        %v249 = vmul.f32 %v247, %v244
        %v250 = vadd.f32 %v229, %v248
        %v251 = vadd.f32 %v230, %v249
        %s252 = sadd.s32 %s174, 2
        %s253 = sld [smem:[#allocation2 + %s252]]
        %v254 = vstv %s253
        %v255 = vmul.f32 %v254, %v175
        %v256 = vmul.f32 %v254, %v176
        %v257 = vadd.f32 %v250, %v255
        %v258 = vadd.f32 %v251, %v256
        %vm259 = vcmp.eq.s32.totalorder %v190, 15
        %v260 = vsel %vm259, %v238, %v232
        %v261 = vsel %vm259, %v240, %v234
        %s262 = sadd.s32 %s174, 3
        %s263 = sld [smem:[#allocation2 + %s262]]
        %v264 = vstv %s263
        %v265 = vmul.f32 %v264, %v260
        %v266 = vmul.f32 %v264, %v261
        %v267 = vadd.f32 %v257, %v265
        %v268 = vadd.f32 %v258, %v266
        %v269 = vsel %vm259, %v217, %v211
        %v270 = vsel %vm259, %v219, %v213
        %vm271 = vcmp.eq.s32.totalorder %v190, 14
        %v272 = vsel %vm271, %v175, %v269
        %v273 = vsel %vm271, %v176, %v270
        %s274 = sadd.s32 %s174, 4
        %s275 = sld [smem:[#allocation2 + %s274]]
        %v276 = vstv %s275
        %v277 = vmul.f32 %v276, %v272
        %v278 = vmul.f32 %v276, %v273
        %v279 = vadd.f32 %v267, %v277
        %v280 = vadd.f32 %v268, %v278
        %v281 = vrot.slane %v279, 1
        %v282 = vrot.slane %v280, 1
        %vm283 = vcmp.lt.s32.totalorder %v192, 7
        %v284 = vsel %vm283, %v281, %v282
        %v285 = vsel %vm283, %v282, %v281
        %v286 = vrot.slane %v279, 7
        %v287 = vrot.slane %v280, 7
        %vm288 = vcmp.lt.s32.totalorder %v192, 1
        %v289 = vsel %vm288, %v286, %v287
        %v290 = vsel %vm288, %v287, %v286
        %v291 = vrot.slane %v279, 2
        %v292 = vrot.slane %v280, 2
        %vm293 = vcmp.lt.s32.totalorder %v192, 6
        %v294 = vsel %vm293, %v291, %v292
        %v295 = vsel %vm293, %v292, %v291
        %v296 = vrot.slane %v279, 6
        %v297 = vrot.slane %v280, 6
        %vm298 = vcmp.lt.s32.totalorder %v192, 2
        %v299 = vsel %vm298, %v296, %v297
        %v300 = vsel %vm298, %v297, %v296
        %vm301 = vcmp.eq.s32.totalorder %v192, 0
        %vm302 = vcmp.eq.s32.totalorder %v193, 0
        %v303 = vsel %vm301, %v294, %v300
        %v304 = vsel %vm302, %v295, %v299
        %vm305 = vcmp.eq.s32.totalorder %v192, 1
        %vm306 = vcmp.eq.s32.totalorder %v193, 1
        %v307 = vsel %vm305, %v279, %v303
        %v308 = vsel %vm306, %v280, %v304
        %s309 = sadd.s32 %s174, 5
        %s310 = sld [smem:[#allocation2 + %s309]]
        %v311 = vstv %s310
        %v312 = vmul.f32 %v311, %v307
        %v313 = vmul.f32 %v311, %v308
        %v314 = vsel %vm301, %v284, %v290
        %v315 = vsel %vm302, %v285, %v289
        %s316 = sadd.s32 %s174, 6
        %s317 = sld [smem:[#allocation2 + %s316]]
        %v318 = vstv %s317
        %v319 = vmul.f32 %v318, %v314
        %v320 = vmul.f32 %v318, %v315
        %v321 = vadd.f32 %v312, %v319
        %v322 = vadd.f32 %v313, %v320
        %s323 = sadd.s32 %s174, 7
        %s324 = sld [smem:[#allocation2 + %s323]]
        %v325 = vstv %s324
        %v326 = vmul.f32 %v325, %v279
        %v327 = vmul.f32 %v325, %v280
        %v328 = vadd.f32 %v321, %v326
        %v329 = vadd.f32 %v322, %v327
        %vm330 = vcmp.eq.s32.totalorder %v192, 15
        %vm331 = vcmp.eq.s32.totalorder %v193, 15
        %v332 = vsel %vm330, %v290, %v284
        %v333 = vsel %vm331, %v289, %v285
        %s334 = sadd.s32 %s174, 8
        %s335 = sld [smem:[#allocation2 + %s334]]
        %v336 = vstv %s335
        %v337 = vmul.f32 %v336, %v332
        %v338 = vmul.f32 %v336, %v333
        %v339 = vadd.f32 %v328, %v337
        %v340 = vadd.f32 %v329, %v338
        %v341 = vsel %vm330, %v300, %v294
        %v342 = vsel %vm331, %v299, %v295
        %vm343 = vcmp.eq.s32.totalorder %v192, 14
        %vm344 = vcmp.eq.s32.totalorder %v193, 14
        %v345 = vsel %vm343, %v279, %v341
        %v346 = vsel %vm344, %v280, %v342
        %s347 = sadd.s32 %s174, 9
        %s348 = sld [smem:[#allocation2 + %s347]]
        %v349 = vstv %s348
        %v350 = vmul.f32 %v349, %v345
        %v351 = vmul.f32 %v349, %v346
        %v352 = vadd.f32 %v339, %v350
        %v353 = vadd.f32 %v340, %v351
        %vm354 = vcmask 523264
        %355 = vst.msk [vmem:[%s173] sm:$0xff] %vm354, %v352
        %356 = vst.msk [vmem:[%s173 + $0x8] sm:$0xff] %vm354, %v353
        %s357 = sand.u32 %s75, 1
        %s358 = scalar_lea.sflag [#allocation4], %s357
        %s359 = sand.u32 %s75, 1
        %s360 = smul.addr %s359, 16
        %s361 = scalar_lea.vmem [#allocation7], %s360
        // Predicated region
        $region37: #{tpu_custom_call.1} parent=27 // pred_check
          %p362 = pneg %p85
        $region38: #{tpu_custom_call.1} parent=27 // pred_check_branch
          %364 = sbr.rel (%p362) target = $region40
        $region39: #{tpu_custom_call.1} parent=27 // pred_region
          %s366 = ssub.s32 256, 256
          %367 = vsyncadd %s358, %s366
          %s368 = smul.addr %s20, 2
          %s369 = smul.addr %s368, 128
          %s370 = scalar_lea.hbm %s2, %s369
          %s371 = sshll.u32 %s361, 4
          %s372 = int_to_ptr.vmem [resolvable:$true] %s371
          %377 = dma.vmem_to_hbm [thread:$0]  %s372, 256, %s370, %s358, 128, 128, 8
        $region40: #{tpu_custom_call.1} parent=27 // pred_fallthru
          _
      $region28: #{tpu_custom_call.1} parent=5 // pred_fallthru
        _
      %p378 = scmp.le.s32.totalorder 2, %s15
      // Predicated region
      $region41: #{tpu_custom_call.1} parent=5 // pred_check
        %p379 = pneg %p378
      $region42: #{tpu_custom_call.1} parent=5 // pred_check_branch
        %381 = sbr.rel (%p379) target = $region44
      $region43: #{tpu_custom_call.1} parent=5 // pred_region
        %s382 = ssub.s32 %s15, 2
        // Predicated region
        $region45: #{tpu_custom_call.1} parent=43 // pred_check
          %p383 = pneg %p91
        $region46: #{tpu_custom_call.1} parent=43 // pred_check_branch
          %385 = sbr.rel (%p383) target = $region48
        $region47: #{tpu_custom_call.1} parent=43 // pred_region
          %s386 = sand.u32 %s76, 1
          %s387 = scalar_lea.sflag [#allocation4], %s386
          %s388 = sand.u32 %s76, 1
          %s389 = smul.addr %s388, 16
          %s390 = scalar_lea.vmem [#allocation7], %s389
          %391 = dma.done %s387, 256
        $region48: #{tpu_custom_call.1} parent=43 // pred_fallthru
          _
      $region44: #{tpu_custom_call.1} parent=5 // pred_fallthru
        _
    $region6: #{tpu_custom_call.1} parent=1 // loop_footer
      %s19 = sadd.s32 1, %s15
    $region7: #{tpu_custom_call.1} parent=1 // loop_footer_branch
      %14 = sbr.rel target = $region3
    $region8: #{tpu_custom_call.1} parent=1 // loop_exit
      _
    %392 = vsyncpa [#allocation3], 1
    %s393 = scalar_lea.sflag [#allocation3], 1
    %394 = vsyncpa %s393, 1
    %395 = vsyncpa [#allocation4], 1
    %s396 = scalar_lea.sflag [#allocation4], 1
    %397 = vsyncpa %s396, 1
    %398 = vsyncpa [#allocation5], 1
    %s399 = scalar_lea.sflag [#allocation5], 1
    %400 = vsyncpa %s399, 1

</llo_original>
